<compile_context>
chip_gen: v7x
topology: tpu7x:2x2x1
jax: 0.10.0
libtpu: 0.0.40
codegen_flags: <defaults>
</compile_context>

<pallas_src>
import functools
import math

import jax
import jax.numpy as jnp
from jax.experimental import pallas as pl
from jax.experimental.pallas import tpu as pltpu


def _masked_matmul_kernel(x_ref, w_ref, o_ref, *, pad_idx, apply_mask):
    # x_ref: (tile_m, P*E) packed rows of the flattened [B*S, E] input
    # w_ref: (P*E, P*D)    block-diagonal weight, resident in VMEM
    # o_ref: (tile_m, P*D) packed output tile (lane-dense stores)
    x = x_ref[...]
    if apply_mask:
        x = jnp.where(x != jnp.asarray(pad_idx, dtype=x.dtype), x, jnp.zeros_like(x))
    if x.dtype != w_ref.dtype:
        x = x.astype(w_ref.dtype)  # VMEM-only cast; HBM stream stays native dtype
    o_ref[...] = jnp.dot(
        x, w_ref[...], preferred_element_type=jnp.float32
    ).astype(o_ref.dtype)


def _round_up(n, m):
    return ((n + m - 1) // m) * m


def _pack_factor(E, D, max_pack=32):
    """Smallest P with P*E and P*D both multiples of 128 (lane-dense), capped."""
    pe = 128 // math.gcd(128, E)
    pd = 128 // math.gcd(128, D)
    p = pe * pd // math.gcd(pe, pd)
    return p if p <= max_pack else 1


def continous_seq_embedding(x, w, pad_idx, *, tm=4096):
    """x: [B, S, E], w: [E, D] -> [B, S, D] (dtype = promote_types(x, w))."""
    B, S, E = x.shape
    E2, D = w.shape
    assert E == E2
    M = B * S

    # pad_idx is a module-construction-time constant -> compile-time decision.
    # float() raises if a traced value is passed (enforces the static contract).
    pad_idx = float(pad_idx)
    apply_mask = pad_idx != 0.0

    out_dtype = jnp.promote_types(x.dtype, w.dtype)

    # Row packing for lane density.  P divides B*S so packing/unpacking are
    # contiguous reshapes (no HBM copies) and no ragged packed row exists.
    P0 = _pack_factor(E, D)
    P = math.gcd(M, P0) if P0 > 1 else 1
    PE, PD = P * E, P * D
    Mp = M // P

    # x_packed[m, j*E + e] == x[flat m*P + j, e]   (bitcast reshape, free)
    x_packed = x.reshape(Mp, PE)

    # Block-diagonal weight: W_bd[j*E+e, j*D+d] = w[e, d]; tiny (<=64 KiB).
    w = w.astype(out_dtype)
    w_bd = jnp.kron(jnp.eye(P, dtype=w.dtype), w) if P > 1 else w

    # Row tiling; ragged tail handled by Pallas (reads clipped, OOB writes dropped).
    tile_m = _round_up(min(tm, Mp), 8)
    grid_m = pl.cdiv(Mp, tile_m)

    itemsize_x = jnp.dtype(x.dtype).itemsize
    itemsize_o = jnp.dtype(out_dtype).itemsize
    block_bytes = tile_m * (PE * itemsize_x + PD * itemsize_o)
    # 2 double-buffered streams + weight (x2) + margin for internal scratch.
    vmem_need = 2 * block_bytes + 2 * PE * PD * itemsize_o + (1 << 20)
    cp_kwargs = dict(dimension_semantics=("parallel",))  # lets v7x shard steps
    if vmem_need > (16 << 20):  # exceeds v5e default scoped VMEM -> raise limit
        cp_kwargs["vmem_limit_bytes"] = int(min(vmem_need + (4 << 20), 64 << 20))

    out_packed = pl.pallas_call(
        functools.partial(
            _masked_matmul_kernel, pad_idx=pad_idx, apply_mask=apply_mask
        ),
        out_shape=jax.ShapeDtypeStruct((Mp, PD), out_dtype),
        grid_spec=pl.GridSpec(
            grid=(grid_m,),
            in_specs=[
                pl.BlockSpec((tile_m, PE), lambda i: (i, 0)),  # packed x rows
                pl.BlockSpec((PE, PD), lambda i: (0, 0)),      # resident weight
            ],
            out_specs=pl.BlockSpec((tile_m, PD), lambda i: (i, 0)),
        ),
        compiler_params=pltpu.CompilerParams(**cp_kwargs),
        cost_estimate=pl.CostEstimate(
            flops=2 * grid_m * tile_m * PE * PD,
            transcendentals=0,
            bytes_accessed=Mp * PE * itemsize_x
            + PE * PD * itemsize_o
            + Mp * PD * itemsize_o,
        ),
    )(x_packed, w_bd)

    # Unpack: (Mp, P*D) -> (B*S, D) -> (B, S, D)   (bitcast reshapes, free)
    return out_packed.reshape(B, S, D)


def _reference(x, w, pad_idx):
    is_pad = (x != pad_idx).astype(x.dtype)
    values = is_pad[..., None] * x[..., None] * w[None, None]
    return jnp.sum(values, axis=-2)


if __name__ == "__main__":
    # Small shapes consistent with the module's forward.
    B, S = 2, 8                 # batch, sequence length
    num_embeddings = 32         # E  (feature dim of the continuous input)
    output_dim = 32             # D
    n_position = 64             # unused in forward (kept for signature parity)

    key = jax.random.PRNGKey(0)
    k_w, k_x, k_mask = jax.random.split(key, 3)

    # torch.nn.init.normal_ -> standard normal.
    w = jax.random.normal(k_w, (num_embeddings, output_dim), dtype=jnp.float32)
    x = jax.random.normal(k_x, (B, S, num_embeddings), dtype=jnp.float32)
    pad_mask = jax.random.bernoulli(k_mask, p=0.3, shape=x.shape)

    # Case 1: pad_idx == 0.0 (module default style) -> mask elided at trace time.
    pad_idx0 = 0.0
    x0 = jnp.where(pad_mask, jnp.float32(pad_idx0), x)
    out0 = jax.block_until_ready(continous_seq_embedding(x0, w, pad_idx0))
    ref0 = _reference(x0, w, pad_idx0)
    assert out0.shape == (B, S, output_dim)
    assert jnp.allclose(out0, ref0, atol=1e-4, rtol=1e-4), "mismatch (pad_idx=0)"

    # Case 2: non-zero pad_idx -> exercises the in-kernel masked path.
    pad_idx1 = -1.0
    x1 = jnp.where(pad_mask, jnp.float32(pad_idx1), x)
    out1 = jax.block_until_ready(continous_seq_embedding(x1, w, pad_idx1))
    ref1 = _reference(x1, w, pad_idx1)
    assert jnp.allclose(out1, ref1, atol=1e-4, rtol=1e-4), "mismatch (pad_idx=-1)"

    # Case 3: odd sequence length (B*S not a multiple of 4) -> P falls back to a
    # smaller divisor, still zero-copy and correct.
    S3 = 7
    x3 = jax.random.normal(jax.random.PRNGKey(3), (B, S3, num_embeddings), jnp.float32)
    x3 = jnp.where(x3 > 1.0, jnp.float32(pad_idx1), x3)
    out3 = jax.block_until_ready(continous_seq_embedding(x3, w, pad_idx1))
    ref3 = _reference(x3, w, pad_idx1)
    assert jnp.allclose(out3, ref3, atol=1e-4, rtol=1e-4), "mismatch (ragged B*S)"

    print("KERNEL_OK")
</pallas_src>

<mosaic_0001>
module attributes {stable_mosaic.version = 11 : i64} {
  func.func @_masked_matmul_kernel(%arg0: i32, %arg1: memref<8x128xf32, #tpu.memory_space<vmem>>, %arg2: memref<128x128xf32, #tpu.memory_space<vmem>>, %arg3: memref<8x128xf32, #tpu.memory_space<vmem>>) attributes {dimension_semantics = [#tpu.dimension_semantics<parallel>], iteration_bounds = array<i64: 1>, scalar_prefetch = 0 : i64, scratch_operands = 0 : i64, tpu.core_type = #tpu.core_type<tc>, window_params = [{transform_indices = @transform_0, window_bounds = array<i64: 8, 128>}, {pipeline_mode = #tpu.pipeline_mode<synchronous>, transform_indices = @transform_1, window_bounds = array<i64: 128, 128>}, {transform_indices = @transform_2, window_bounds = array<i64: 8, 128>}]} {
    %c0 = arith.constant 0 : index
    %c0_0 = arith.constant 0 : index
    %0 = vector.load %arg1[%c0, %c0_0] : memref<8x128xf32, #tpu.memory_space<vmem>>, vector<8x128xf32>
    %c0_1 = arith.constant 0 : index
    %c0_2 = arith.constant 0 : index
    %1 = vector.load %arg2[%c0_1, %c0_2] : memref<128x128xf32, #tpu.memory_space<vmem>>, vector<128x128xf32>
    %cst = arith.constant dense<0.000000e+00> : vector<8x128xf32>
    %2 = tpu.matmul %0, %1, %cst {dimension_numbers = #tpu.dot_dimension_numbers<[1], [0], [0], [1], [0, 0, 1, 1], [], []>} : vector<8x128xf32>, vector<128x128xf32>, vector<8x128xf32> -> vector<8x128xf32>
    %c0_3 = arith.constant 0 : index
    %c0_4 = arith.constant 0 : index
    %3 = vector.load %arg3[%c0_3, %c0_4] : memref<8x128xf32, #tpu.memory_space<vmem>>, vector<8x128xf32>
    tpu.vector_store %arg3[%c0_3, %c0_4], %2 {strides = array<i32>} : memref<8x128xf32, #tpu.memory_space<vmem>>, vector<8x128xf32>,
    return
  }
  func.func @transform_0(%arg0: i32) -> (i32, i32) {
    %c0_i32 = arith.constant 0 : i32
    %c0_i32_0 = arith.constant 0 : i32
    return %arg0, %c0_i32 : i32, i32
  }
  func.func @transform_1(%arg0: i32) -> (i32, i32) {
    %c0_i32 = arith.constant 0 : i32
    %c0_i32_0 = arith.constant 0 : i32
    %c0_i32_1 = arith.constant 0 : i32
    return %c0_i32, %c0_i32_0 : i32, i32
  }
  func.func @transform_2(%arg0: i32) -> (i32, i32) {
    %c0_i32 = arith.constant 0 : i32
    %c0_i32_0 = arith.constant 0 : i32
    return %arg0, %c0_i32 : i32, i32
  }
}

</mosaic_0001>

<llo_original>
// kernel: tpu_custom_call.1
$region0: #{tpu_custom_call.1}
  #allocation0 [shape = 'u32[]', space=smem, size = 0x4, offset = 0x4, fixed_abs, tag = 'smem constant byte address 0x4 - core index']
  #allocation1 [shape = 'u32[144,128]{1,0:T(1,128)}', space=vmem, size = 0x12000, scoped, tag = 'internal scratch']
  %s0 = inlined_call_operand.hbm [shape: f32[4,128], index: 0, kind: input, shape index: {}]
  %s1 = inlined_call_operand.hbm [shape: f32[128,128], index: 1, kind: input, shape index: {}]
  %s2 = inlined_call_operand.hbm [shape: f32[4,128], index: 2, kind: output, shape index: {}]
  %s3 = sld [smem:[#allocation0]]
  $region26: #{tpu_custom_call.1} parent=0
    _
  %s5 = ssub.s32 1, %s3
  %s6 = scalar_select 0, %s5, %s3
  $region1: #{tpu_custom_call.1} parent=0
    #allocation2 [shape = 'u8[4096]{0}', space=vmem, size = 0x1000, scoped, tag = 'input window, operand 0, single buffered']
    #allocation3 [shape = 's32[1]{0}', space=sflag, size = 0x4, scoped, tag = 'scoped memory for tpu_custom_call.1']
    #allocation4 [shape = 's32[1]{0}', space=sflag, size = 0x4, scoped, tag = 'scoped memory for tpu_custom_call.1']
    #allocation5 [shape = 'u8[65536]{0}', space=vmem, size = 0x10000, scoped, tag = 'input window, operand 1, single buffered']
    #allocation6 [shape = 's32[1]{0}', space=sflag, size = 0x4, scoped, tag = 'scoped memory for tpu_custom_call.1']
    #allocation7 [shape = 'u8[4096]{0}', space=vmem, size = 0x1000, scoped, tag = 'output window, operand 0, single buffered']
    %7 = vsyncpa [#allocation3], 0
    %8 = vsyncpa [#allocation6], 0
    %9 = vsyncpa [#allocation4], 0
    // Predicated region
    $region2: #{tpu_custom_call.1} parent=1 // pred_check
      _
    $region3: #{tpu_custom_call.1} parent=1 // pred_check_branch
      %11 = sbr.rel (0) target = $region5
    $region4: #{tpu_custom_call.1} parent=1 // pred_region
      %s13 = ssub.s32 128, 64
      %14 = vsyncadd [#allocation3], %s13
      %s15 = sshll.u32 [#allocation2], 4
      %s16 = int_to_ptr.vmem [resolvable:$true] %s15
      %21 = dma.hbm_to_vmem [thread:$0]  %s0, 64, %s16, [#allocation3], 64, 64, 4
    $region5: #{tpu_custom_call.1} parent=1 // pred_fallthru
      _
    // Predicated region
    $region6: #{tpu_custom_call.1} parent=1 // pred_check
      _
    $region7: #{tpu_custom_call.1} parent=1 // pred_check_branch
      %23 = sbr.rel (0) target = $region9
    $region8: #{tpu_custom_call.1} parent=1 // pred_region
      %s25 = ssub.s32 2048, 2048
      %26 = vsyncadd [#allocation6], %s25
      %s27 = sshll.u32 [#allocation5], 4
      %s28 = int_to_ptr.vmem [resolvable:$true] %s27
      %33 = dma.hbm_to_vmem [thread:$0]  %s1, 2048, %s28, [#allocation6], 128, 128, 8
    $region9: #{tpu_custom_call.1} parent=1 // pred_fallthru
      _
    // Predicated region
    $region10: #{tpu_custom_call.1} parent=1 // pred_check
      _
    $region11: #{tpu_custom_call.1} parent=1 // pred_check_branch
      %35 = sbr.rel (0) target = $region13
    $region12: #{tpu_custom_call.1} parent=1 // pred_region
      %36 = dma.done [#allocation3], 128
    $region13: #{tpu_custom_call.1} parent=1 // pred_fallthru
      _
    // Predicated region
    $region14: #{tpu_custom_call.1} parent=1 // pred_check
      _
    $region15: #{tpu_custom_call.1} parent=1 // pred_check_branch
      %38 = sbr.rel (0) target = $region17
    $region16: #{tpu_custom_call.1} parent=1 // pred_region
      %39 = dma.done [#allocation6], 2048
    $region17: #{tpu_custom_call.1} parent=1 // pred_fallthru
      _
    %v40 = vld [vmem:[#allocation2] sm:$0xff]
    %v41 = vld [vmem:[#allocation5] sm:$0xff]
    %v42 = vld [vmem:[#allocation5 + $0x8] sm:$0xff]
    %v43 = vld [vmem:[#allocation5 + $0x10] sm:$0xff]
    %v44 = vld [vmem:[#allocation5 + $0x18] sm:$0xff]
    %v45 = vld [vmem:[#allocation5 + $0x20] sm:$0xff]
    %v46 = vld [vmem:[#allocation5 + $0x28] sm:$0xff]
    %v47 = vld [vmem:[#allocation5 + $0x30] sm:$0xff]
    %v48 = vld [vmem:[#allocation5 + $0x38] sm:$0xff]
    %v49 = vld [vmem:[#allocation5 + $0x40] sm:$0xff]
    %v50 = vld [vmem:[#allocation5 + $0x48] sm:$0xff]
    %v51 = vld [vmem:[#allocation5 + $0x50] sm:$0xff]
    %v52 = vld [vmem:[#allocation5 + $0x58] sm:$0xff]
    %v53 = vld [vmem:[#allocation5 + $0x60] sm:$0xff]
    %v54 = vld [vmem:[#allocation5 + $0x68] sm:$0xff]
    %v55 = vld [vmem:[#allocation5 + $0x70] sm:$0xff]
    %v56 = vld [vmem:[#allocation5 + $0x78] sm:$0xff]
    %57 = vmatprep.subr.mxu0 0.0
    %58 = vmatpush1.msra.mxu0 %v41
    %59 = vmatprep.subr.mxu0 0.0
    %60 = vmatpush1.msra.mxu0 %v42
    %61 = vmatprep.subr.mxu0 0.0
    %62 = vmatpush1.msra.mxu0 %v43
    %63 = vmatprep.subr.mxu0 0.0
    %64 = vmatpush1.msra.mxu0 %v44
    %65 = vmatprep.subr.mxu0 0.0
    %66 = vmatpush1.msra.mxu0 %v45
    %67 = vmatprep.subr.mxu0 0.0
    %68 = vmatpush1.msra.mxu0 %v46
    %69 = vmatprep.subr.mxu0 0.0
    %70 = vmatpush1.msra.mxu0 %v47
    %71 = vmatprep.subr.mxu0 0.0
    %72 = vmatpush1.msra.mxu0 %v48
    %73 = vmatprep.subr.mxu0 0.0
    %74 = vmatpush1.msra.mxu0 %v49
    %75 = vmatprep.subr.mxu0 0.0
    %76 = vmatpush1.msra.mxu0 %v50
    %77 = vmatprep.subr.mxu0 0.0
    %78 = vmatpush1.msra.mxu0 %v51
    %79 = vmatprep.subr.mxu0 0.0
    %80 = vmatpush1.msra.mxu0 %v52
    %81 = vmatprep.subr.mxu0 0.0
    %82 = vmatpush1.msra.mxu0 %v53
    %83 = vmatprep.subr.mxu0 0.0
    %84 = vmatpush1.msra.mxu0 %v54
    %85 = vmatprep.subr.mxu0 0.0
    %86 = vmatpush1.msra.mxu0 %v55
    %87 = vmatprep.subr.mxu0 0.0
    %88 = vmatpush1.msra.mxu0 %v56
    %89 = vmatprep.subr.mxu0 0.0
    %90 = vmatpush1.msra.mxu0 0.0
    %91 = vmatprep.subr.mxu0 0.0
    %92 = vmatpush1.msra.mxu0 0.0
    %93 = vmatprep.subr.mxu0 0.0
    %94 = vmatpush1.msra.mxu0 0.0
    %95 = vmatprep.subr.mxu0 0.0
    %96 = vmatpush1.msra.mxu0 0.0
    %97 = vmatprep.subr.mxu0 0.0
    %98 = vmatpush1.msra.mxu0 0.0
    %99 = vmatprep.subr.mxu0 0.0
    %100 = vmatpush1.msra.mxu0 0.0
    %101 = vmatprep.subr.mxu0 0.0
    %102 = vmatpush1.msra.mxu0 0.0
    %103 = vmatprep.subr.mxu0 0.0
    %104 = vmatpush1.msra.mxu0 0.0
    %105 = vmatprep.subr.mxu0 0.0
    %106 = vmatpush1.msra.mxu0 0.0
    %107 = vmatprep.subr.mxu0 0.0
    %108 = vmatpush1.msra.mxu0 0.0
    %109 = vmatprep.subr.mxu0 0.0
    %110 = vmatpush1.msra.mxu0 0.0
    %111 = vmatprep.subr.mxu0 0.0
    %112 = vmatpush1.msra.mxu0 0.0
    %113 = vmatprep.subr.mxu0 0.0
    %114 = vmatpush1.msra.mxu0 0.0
    %115 = vmatprep.subr.mxu0 0.0
    %116 = vmatpush1.msra.mxu0 0.0
    %117 = vmatprep.subr.mxu0 0.0
    %118 = vmatpush1.msra.mxu0 0.0
    %119 = vmatprep.subr.mxu0 0.0
    %120 = vmatpush1.msra.mxu0 0.0
    %121 = vmatprep.mubr.f32.mxu0 0.0
    %122 = vmatmul.mubr.f32.gmra.mrb[0].mxu0 %v40
    %v123 = vpop.f32.mrb[0].mxu0
    %v124 = vadd.f32 0.0, %v123
    %v125 = vpop.f32.mrb[0].mxu0
    %126 = vdwg.mxu0
    %127 = vst [vmem:[#allocation7] sm:$0xff] %v124
    // Predicated region
    $region18: #{tpu_custom_call.1} parent=1 // pred_check
      _
    $region19: #{tpu_custom_call.1} parent=1 // pred_check_branch
      %129 = sbr.rel (0) target = $region21
    $region20: #{tpu_custom_call.1} parent=1 // pred_region
      %s131 = ssub.s32 128, 64
      %132 = vsyncadd [#allocation4], %s131
      %s133 = sshll.u32 [#allocation7], 4
      %s134 = int_to_ptr.vmem [resolvable:$true] %s133
      %139 = dma.vmem_to_hbm [thread:$0]  %s134, 64, %s2, [#allocation4], 64, 64, 4
    $region21: #{tpu_custom_call.1} parent=1 // pred_fallthru
      _
    // Predicated region
    $region22: #{tpu_custom_call.1} parent=1 // pred_check
      _
    $region23: #{tpu_custom_call.1} parent=1 // pred_check_branch
      %141 = sbr.rel (0) target = $region25
    $region24: #{tpu_custom_call.1} parent=1 // pred_region
      %142 = dma.done [#allocation4], 128
    $region25: #{tpu_custom_call.1} parent=1 // pred_fallthru
      _
    %143 = vsyncpa [#allocation3], 1
    %144 = vsyncpa [#allocation6], 1
    %145 = vsyncpa [#allocation4], 1

</llo_original>
